<compile_context>
chip_gen: v6e
topology: v6e:2x2x1
jax: 0.10.0
libtpu: 0.0.40
codegen_flags: <defaults>
</compile_context>

<pallas_src>
import jax
import jax.numpy as jnp
from jax.experimental import pallas as pl
from jax.experimental.pallas import tpu as pltpu


def membership_kernel(params_ref, x_ref, o_ref):
    # params_ref: SMEM, shape (2,) -> [center c, scale = -0.5 / sigma^2]
    # x_ref/o_ref: VMEM tiles of shape (tile_b, D)
    c = params_ref[0]
    scale = params_ref[1]
    d = x_ref[...] - c
    o_ref[...] = jnp.exp(scale * (d * d))


def _choose_tile_b(B, D, target_block_bytes=4 << 20):
    """Pick a batch-tile giving ~target_block_bytes blocks (no divisibility req)."""
    row_bytes = D * 4
    if B <= 8:
        # Full-extent block on the sublane axis (satisfies the (8,128) rule
        # because the block dim equals the full array dim).
        return B
    max_rows = max(8, target_block_bytes // row_bytes)
    tile_b = min(B, max_rows)
    tile_b = max(8, (tile_b // 8) * 8)          # multiple of 8 (sublane granule)
    # v7x has 2 TensorCores; make sure large arrays produce >= 2 parallel
    # grid steps so both cores get work.  v5e/v6e (1 TC) are unaffected.
    if B * row_bytes > (8 << 20):
        half = max(8, ((B + 1) // 2 // 8) * 8)
        tile_b = min(tile_b, half)
    return tile_b


def gaussian_membership(x, center, sigma, *, force_pallas=False):
    """mu(x) = exp(-0.5 * ((x - c) / sigma)^2), elementwise, via Pallas."""
    x = jnp.asarray(x, jnp.float32)
    B, D = x.shape

    # Scalar parameter math hoisted out of the kernel; no clamp so sigma == 0
    # produces inf/NaN exactly like the PyTorch reference would.
    c = jnp.asarray(center, jnp.float32).reshape(())
    s = jnp.asarray(sigma, jnp.float32).reshape(())
    scale = jnp.float32(-0.5) / (s * s)

    # Tiny inputs (or awkward lane dims): a fused XLA elementwise op is
    # strictly cheaper than a custom-call + pipeline setup.
    total_bytes = B * D * 4
    if (not force_pallas) and (total_bytes < (1 << 20) or D % 128 != 0):
        diff = x - c
        return jnp.exp(scale * (diff * diff))

    assert D % 128 == 0, "feature (lane) axis must be a multiple of 128 for the Pallas path"

    params = jnp.stack([c, scale])              # shape (2,), float32 (SMEM)

    tile_b = _choose_tile_b(B, D)
    grid = (pl.cdiv(B, tile_b),)

    cost = pl.CostEstimate(
        flops=3 * B * D,              # sub + 2 mul per element
        transcendentals=B * D,        # one exp per element
        bytes_accessed=8 * B * D,     # f32 in + f32 out
    )

    return pl.pallas_call(
        membership_kernel,
        out_shape=jax.ShapeDtypeStruct((B, D), jnp.float32),
        grid=grid,
        in_specs=[
            pl.BlockSpec(memory_space=pltpu.SMEM),          # scalar params
            pl.BlockSpec((tile_b, D), lambda i: (i, 0)),    # x tile
        ],
        out_specs=pl.BlockSpec((tile_b, D), lambda i: (i, 0)),
        compiler_params=pltpu.CompilerParams(
            dimension_semantics=("parallel",),
            vmem_limit_bytes=32 * 1024 * 1024,  # 4 MiB tiles x 2 bufs x (in+out) = 16 MiB << 32 MiB
        ),
        cost_estimate=cost,
    )(params, x)


if __name__ == "__main__":
    key = jax.random.PRNGKey(0)

    # Deterministic scalar parameters, as _initialize would create them.
    center = jnp.float32(0.5)   # nn.Parameter(torch.FloatTensor([0.5]))
    sigma = jnp.float32(1.5)    # nn.Parameter(torch.FloatTensor([1.5]))

    # Small shape consistent with a membership function over feature vectors.
    B, D = 16, 256
    x = jax.random.normal(key, (B, D), dtype=jnp.float32)
    out = gaussian_membership(x, center, sigma, force_pallas=True)
    out = jax.block_until_ready(out)
    ref = jnp.exp(-0.5 * ((x - center) / sigma) ** 2)
    assert out.shape == (B, D) and out.dtype == jnp.float32
    assert jnp.allclose(out, ref, atol=1e-6, rtol=1e-6)

    # Second check: batch not a multiple of the tile (ragged last block via cdiv).
    B2 = 2052
    x2 = jax.random.normal(jax.random.PRNGKey(1), (B2, D), dtype=jnp.float32)
    out2 = gaussian_membership(x2, center, sigma, force_pallas=True)
    out2 = jax.block_until_ready(out2)
    ref2 = jnp.exp(-0.5 * ((x2 - center) / sigma) ** 2)
    assert out2.shape == (B2, D)
    assert jnp.allclose(out2, ref2, atol=1e-6, rtol=1e-6)

    print("KERNEL_OK")
</pallas_src>

<mosaic_0001>
module attributes {stable_mosaic.version = 11 : i64} {
  func.func @membership_kernel(%arg0: i32, %arg1: memref<2xf32, #tpu.memory_space<smem>>, %arg2: memref<16x256xf32, #tpu.memory_space<vmem>>, %arg3: memref<16x256xf32, #tpu.memory_space<vmem>>) attributes {dimension_semantics = [#tpu.dimension_semantics<parallel>], iteration_bounds = array<i64: 1>, scalar_prefetch = 0 : i64, scratch_operands = 0 : i64, tpu.core_type = #tpu.core_type<tc>, window_params = [{transform_indices = @transform_0, window_bounds = array<i64: 2>}, {transform_indices = @transform_1, window_bounds = array<i64: 16, 256>}, {transform_indices = @transform_2, window_bounds = array<i64: 16, 256>}]} {
    %c0 = arith.constant 0 : index
    %0 = memref.load %arg1[%c0] : memref<2xf32, #tpu.memory_space<smem>>
    %c1 = arith.constant 1 : index
    %1 = memref.load %arg1[%c1] : memref<2xf32, #tpu.memory_space<smem>>
    %c0_0 = arith.constant 0 : index
    %c0_1 = arith.constant 0 : index
    %2 = vector.load %arg2[%c0_0, %c0_1] : memref<16x256xf32, #tpu.memory_space<vmem>>, vector<16x256xf32>
    %3 = vector.broadcast %0 : f32 to vector<16x256xf32>
    %4 = arith.subf %2, %3 : vector<16x256xf32>
    %5 = arith.mulf %4, %4 : vector<16x256xf32>
    %6 = vector.broadcast %1 : f32 to vector<16x256xf32>
    %7 = arith.mulf %6, %5 : vector<16x256xf32>
    %8 = math.exp %7 : vector<16x256xf32>
    %c0_2 = arith.constant 0 : index
    %c0_3 = arith.constant 0 : index
    %9 = vector.load %arg3[%c0_2, %c0_3] : memref<16x256xf32, #tpu.memory_space<vmem>>, vector<16x256xf32>
    tpu.vector_store %arg3[%c0_2, %c0_3], %8 {strides = array<i32>} : memref<16x256xf32, #tpu.memory_space<vmem>>, vector<16x256xf32>,
    return
  }
  func.func @transform_0(%arg0: i32) -> i32 {
    %c0_i32 = arith.constant 0 : i32
    %c0_i32_0 = arith.constant 0 : i32
    return %c0_i32 : i32
  }
  func.func @transform_1(%arg0: i32) -> (i32, i32) {
    %c0_i32 = arith.constant 0 : i32
    %c0_i32_0 = arith.constant 0 : i32
    return %arg0, %c0_i32 : i32, i32
  }
  func.func @transform_2(%arg0: i32) -> (i32, i32) {
    %c0_i32 = arith.constant 0 : i32
    %c0_i32_0 = arith.constant 0 : i32
    return %arg0, %c0_i32 : i32, i32
  }
}

</mosaic_0001>

<llo_original>
// kernel: tpu_custom_call.1
$region0: #{tpu_custom_call.1}
  #allocation0 [shape = 'u32[]', space=smem, size = 0x4, offset = 0x4, fixed_abs, tag = 'smem constant byte address 0x4 - core index']
  #allocation1 [shape = 'u32[144,128]{1,0:T(1,128)}', space=vmem, size = 0x12000, scoped, tag = 'internal scratch']
  %s0 = inlined_call_operand.hbm [shape: f32[2], index: 0, kind: input, shape index: {}]
  %s1 = inlined_call_operand.hbm [shape: f32[16,256], index: 1, kind: input, shape index: {}]
  %s2 = inlined_call_operand.hbm [shape: f32[16,256], index: 2, kind: output, shape index: {}]
  %s3 = sld [smem:[#allocation0]]
  $region26: #{tpu_custom_call.1} parent=0
    _
  %s5 = ssub.s32 1, %s3
  %s6 = scalar_select 0, %s5, %s3
  $region1: #{tpu_custom_call.1} parent=0
    #allocation2 [shape = 'u8[512]{0}', space=smem, size = 0x200, scoped, tag = 'input window, operand 0, single buffered']
    #allocation3 [shape = 's32[1]{0}', space=sflag, size = 0x4, scoped, tag = 'scoped memory for tpu_custom_call.1']
    #allocation4 [shape = 's32[1]{0}', space=sflag, size = 0x4, scoped, tag = 'scoped memory for tpu_custom_call.1']
    #allocation5 [shape = 's32[1]{0}', space=sflag, size = 0x4, scoped, tag = 'scoped memory for tpu_custom_call.1']
    #allocation6 [shape = 'u8[16384]{0}', space=vmem, size = 0x4000, scoped, tag = 'input window, operand 1, single buffered']
    #allocation7 [shape = 'u8[16384]{0}', space=vmem, size = 0x4000, scoped, tag = 'output window, operand 0, single buffered']
    %7 = vsyncpa [#allocation5], 0
    %8 = vsyncpa [#allocation3], 0
    %9 = vsyncpa [#allocation4], 0
    // Predicated region
    $region2: #{tpu_custom_call.1} parent=1 // pred_check
      _
    $region3: #{tpu_custom_call.1} parent=1 // pred_check_branch
      %11 = sbr.rel (0) target = $region5
    $region4: #{tpu_custom_call.1} parent=1 // pred_region
      %s13 = ssub.s32 16, 16
      %14 = vsyncadd [#allocation5], %s13
      %17 = dma.hbm_to_smem %s0, 16, [#allocation2], [#allocation5]
    $region5: #{tpu_custom_call.1} parent=1 // pred_fallthru
      _
    // Predicated region
    $region6: #{tpu_custom_call.1} parent=1 // pred_check
      _
    $region7: #{tpu_custom_call.1} parent=1 // pred_check_branch
      %19 = sbr.rel (0) target = $region9
    $region8: #{tpu_custom_call.1} parent=1 // pred_region
      %s21 = ssub.s32 512, 512
      %22 = vsyncadd [#allocation3], %s21
      %s23 = sshll.u32 [#allocation6], 4
      %s24 = int_to_ptr.vmem [resolvable:$true] %s23
      %29 = dma.hbm_to_vmem [thread:$0]  %s1, 512, %s24, [#allocation3], 256, 256, 16
    $region9: #{tpu_custom_call.1} parent=1 // pred_fallthru
      _
    // Predicated region
    $region10: #{tpu_custom_call.1} parent=1 // pred_check
      _
    $region11: #{tpu_custom_call.1} parent=1 // pred_check_branch
      %31 = sbr.rel (0) target = $region13
    $region12: #{tpu_custom_call.1} parent=1 // pred_region
      %32 = dma.done [#allocation5], 16
    $region13: #{tpu_custom_call.1} parent=1 // pred_fallthru
      _
    // Predicated region
    $region14: #{tpu_custom_call.1} parent=1 // pred_check
      _
    $region15: #{tpu_custom_call.1} parent=1 // pred_check_branch
      %34 = sbr.rel (0) target = $region17
    $region16: #{tpu_custom_call.1} parent=1 // pred_region
      %35 = dma.done [#allocation3], 512
    $region17: #{tpu_custom_call.1} parent=1 // pred_fallthru
      _
    %36 = sfence
    %s37 = sld [smem:[#allocation2]]
    %s38 = sld [smem:[#allocation2 + $0x1]]
    %v39 = vld [vmem:[#allocation6] sm:$0xff]
    %v40 = vld [vmem:[#allocation6 + $0x8] sm:$0xff]
    %v41 = vld [vmem:[#allocation6 + $0x10] sm:$0xff]
    %v42 = vld [vmem:[#allocation6 + $0x18] sm:$0xff]
    %v43 = vstv %s37
    %v44 = vsub.f32 %v39, %v43
    %v45 = vsub.f32 %v40, %v43
    %v46 = vsub.f32 %v41, %v43
    %v47 = vsub.f32 %v42, %v43
    %v48 = vmul.f32 %v44, %v44
    %v49 = vmul.f32 %v45, %v45
    %v50 = vmul.f32 %v46, %v46
    %v51 = vmul.f32 %v47, %v47
    %v52 = vstv %s38
    %v53 = vmul.f32 %v52, %v48
    %v54 = vmul.f32 %v52, %v49
    %v55 = vmul.f32 %v52, %v50
    %v56 = vmul.f32 %v52, %v51
    %v57 = vmul.f32 %v53, 1.442695
    %v58 = vpow.pop %v57
    %v59 = vmul.f32 %v54, 1.442695
    %v60 = vpow.pop %v59
    %v61 = vmul.f32 %v55, 1.442695
    %v62 = vpow.pop %v61
    %v63 = vmul.f32 %v56, 1.442695
    %v64 = vpow.pop %v63
    %65 = vst [vmem:[#allocation7] sm:$0xff] %v58
    %66 = vst [vmem:[#allocation7 + $0x8] sm:$0xff] %v60
    %67 = vst [vmem:[#allocation7 + $0x10] sm:$0xff] %v62
    %68 = vst [vmem:[#allocation7 + $0x18] sm:$0xff] %v64
    // Predicated region
    $region18: #{tpu_custom_call.1} parent=1 // pred_check
      _
    $region19: #{tpu_custom_call.1} parent=1 // pred_check_branch
      %70 = sbr.rel (0) target = $region21
    $region20: #{tpu_custom_call.1} parent=1 // pred_region
      %s72 = ssub.s32 512, 512
      %73 = vsyncadd [#allocation4], %s72
      %s74 = sshll.u32 [#allocation7], 4
      %s75 = int_to_ptr.vmem [resolvable:$true] %s74
      %80 = dma.vmem_to_hbm [thread:$0]  %s75, 512, %s2, [#allocation4], 256, 256, 16
    $region21: #{tpu_custom_call.1} parent=1 // pred_fallthru
      _
    // Predicated region
    $region22: #{tpu_custom_call.1} parent=1 // pred_check
      _
    $region23: #{tpu_custom_call.1} parent=1 // pred_check_branch
      %82 = sbr.rel (0) target = $region25
    $region24: #{tpu_custom_call.1} parent=1 // pred_region
      %83 = dma.done [#allocation4], 512
    $region25: #{tpu_custom_call.1} parent=1 // pred_fallthru
      _
    %84 = vsyncpa [#allocation3], 1
    %85 = vsyncpa [#allocation4], 1
    %86 = vsyncpa [#allocation5], 1

</llo_original>
